<compile_context>
chip_gen: v5e
topology: v5e:2x2
jax: 0.10.0
libtpu: 0.0.40
codegen_flags: <defaults>
</compile_context>

<pallas_src>
import jax
import jax.numpy as jnp
from jax.experimental import pallas as pl
from jax.experimental.pallas import tpu as pltpu

DROPOUT_P = 0.2


def _sdpa_dropout_kernel(scale_ref, q_ref, k_ref, v_ref, mask_ref, o_ref):
    # scale_ref: (1,) f32 in SMEM; q/k/v/mask/o: full slabs in VMEM.
    scale = scale_ref[0]

    # Fold the scalar scale into Q (Sq*D elements instead of Sq*Sk scores).
    q = q_ref[...].astype(jnp.float32) * scale        # (BH, Sq, D)
    k = k_ref[...].astype(jnp.float32)                # (BH, Sk, D)
    v = v_ref[...].astype(jnp.float32)                # (BH, Sk, D)

    # (q * scale) @ k^T  == (q @ k^T) * scale ; contract over D, no explicit .T
    qk = jnp.einsum('bqd,bkd->bqk', q, k,
                    preferred_element_type=jnp.float32)       # (BH, Sq, Sk)

    # softmax over the last dim
    m = jnp.max(qk, axis=-1, keepdims=True)
    e = jnp.exp(qk - m)
    inv_denom = 1.0 / jnp.sum(e, axis=-1, keepdims=True)      # (BH, Sq, 1)

    # dropout: mask is keep/(1-p) (zeros where dropped), so one fused multiply
    # handles softmax normalization + dropout + inverted scaling.
    dropped = e * (mask_ref[...] * inv_denom)                  # (BH, Sq, Sk)

    o_ref[...] = jnp.einsum('bqk,bkd->bqd', dropped, v,
                            preferred_element_type=jnp.float32).astype(o_ref.dtype)


def sdpa_dropout(query, key, value, inv_scale_factor, dropout_rng,
                 dropout_p=DROPOUT_P):
    """query: (B,H,Sq,D), key/value: (B,H,Sk,D), inv_scale_factor: (1,)."""
    B, H, Sq, D = query.shape
    Sk = key.shape[2]
    BH = B * H

    q = query.reshape(BH, Sq, D).astype(jnp.float32)
    k = key.reshape(BH, Sk, D).astype(jnp.float32)
    v = value.reshape(BH, Sk, D).astype(jnp.float32)
    scale = inv_scale_factor.reshape(1).astype(jnp.float32)

    # Training-mode dropout mask (PyTorch semantics): keep w.p. 1-p, scale 1/(1-p).
    keep = jax.random.bernoulli(dropout_rng, 1.0 - dropout_p, (BH, Sq, Sk))
    mask = keep.astype(jnp.float32) * (1.0 / (1.0 - dropout_p))

    out = pl.pallas_call(
        _sdpa_dropout_kernel,
        out_shape=jax.ShapeDtypeStruct((BH, Sq, D), jnp.float32),
        in_specs=[
            pl.BlockSpec(memory_space=pltpu.MemorySpace.SMEM),   # scalar scale
            pl.BlockSpec(memory_space=pltpu.MemorySpace.VMEM),   # q (full slab)
            pl.BlockSpec(memory_space=pltpu.MemorySpace.VMEM),   # k
            pl.BlockSpec(memory_space=pltpu.MemorySpace.VMEM),   # v
            pl.BlockSpec(memory_space=pltpu.MemorySpace.VMEM),   # dropout mask
        ],
        out_specs=pl.BlockSpec(memory_space=pltpu.MemorySpace.VMEM),
    )(scale, q, k, v, mask)

    return out.reshape(B, H, Sq, D)


if __name__ == "__main__":
    # Small shapes consistent with the module's (B, H, Sq/Sk, D) convention.
    B, H, Sq, Sk, D = 2, 2, 8, 16, 32

    root = jax.random.PRNGKey(0)
    kq, kk, kv, ks, kd = jax.random.split(root, 5)

    query = jax.random.normal(kq, (B, H, Sq, D), dtype=jnp.float32)
    key = jax.random.normal(kk, (B, H, Sk, D), dtype=jnp.float32)
    value = jax.random.normal(kv, (B, H, Sk, D), dtype=jnp.float32)
    inv_scale_factor1 = jax.random.normal(ks, (1,), dtype=jnp.float32)

    out = sdpa_dropout(query, key, value, inv_scale_factor1, kd)
    jax.block_until_ready(out)

    assert out.shape == (B, H, Sq, D)
    assert out.dtype == jnp.float32
    print("KERNEL_OK")
</pallas_src>

<mosaic_0001>
module attributes {stable_mosaic.version = 11 : i64} {
  func.func @_sdpa_dropout_kernel(%arg0: memref<1xf32, #tpu.memory_space<smem>>, %arg1: memref<4x8x32xf32, #tpu.memory_space<vmem>>, %arg2: memref<4x16x32xf32, #tpu.memory_space<vmem>>, %arg3: memref<4x16x32xf32, #tpu.memory_space<vmem>>, %arg4: memref<4x8x16xf32, #tpu.memory_space<vmem>>, %arg5: memref<4x8x32xf32, #tpu.memory_space<vmem>>) attributes {dimension_semantics = [], scalar_prefetch = 0 : i64, scratch_operands = 0 : i64, tpu.core_type = #tpu.core_type<tc>} {
    %c0 = arith.constant 0 : index
    %0 = memref.load %arg0[%c0] : memref<1xf32, #tpu.memory_space<smem>>
    %c0_0 = arith.constant 0 : index
    %c0_1 = arith.constant 0 : index
    %c0_2 = arith.constant 0 : index
    %1 = vector.load %arg1[%c0_0, %c0_1, %c0_2] : memref<4x8x32xf32, #tpu.memory_space<vmem>>, vector<4x8x32xf32>
    %2 = vector.broadcast %0 : f32 to vector<4x8x32xf32>
    %3 = arith.mulf %1, %2 : vector<4x8x32xf32>
    %c0_3 = arith.constant 0 : index
    %c0_4 = arith.constant 0 : index
    %c0_5 = arith.constant 0 : index
    %4 = vector.load %arg2[%c0_3, %c0_4, %c0_5] : memref<4x16x32xf32, #tpu.memory_space<vmem>>, vector<4x16x32xf32>
    %c0_6 = arith.constant 0 : index
    %c0_7 = arith.constant 0 : index
    %c0_8 = arith.constant 0 : index
    %5 = vector.load %arg3[%c0_6, %c0_7, %c0_8] : memref<4x16x32xf32, #tpu.memory_space<vmem>>, vector<4x16x32xf32>
    "tpu.trace_start"() <{level = 10 : i32, message = "bqd,bkd->bqk"}> : () -> ()
    %cst = arith.constant dense<0.000000e+00> : vector<4x8x16xf32>
    %6 = tpu.matmul %3, %4, %cst {dimension_numbers = #tpu.dot_dimension_numbers<[2], [2], [1], [1], [0, 0, 0, 1, 1, 1], [0], [0]>} : vector<4x8x32xf32>, vector<4x16x32xf32>, vector<4x8x16xf32> -> vector<4x8x16xf32>
    "tpu.trace_stop"() : () -> ()
    %cst_9 = arith.constant dense<0xFF800000> : vector<4x8xf32>
    %7 = vector.multi_reduction <maximumf>, %6, %cst_9 [2] : vector<4x8x16xf32> to vector<4x8xf32>
    %8 = vector.shape_cast %7 : vector<4x8xf32> to vector<4x8x1xf32>
    %9 = vector.broadcast %8 : vector<4x8x1xf32> to vector<4x8x16xf32>
    %10 = arith.subf %6, %9 : vector<4x8x16xf32>
    %11 = math.exp %10 : vector<4x8x16xf32>
    %cst_10 = arith.constant dense<0.000000e+00> : vector<4x8xf32>
    %12 = vector.multi_reduction <add>, %11, %cst_10 [2] : vector<4x8x16xf32> to vector<4x8xf32>
    %13 = vector.shape_cast %12 : vector<4x8xf32> to vector<4x8x1xf32>
    %cst_11 = arith.constant 1.000000e+00 : f32
    %14 = vector.broadcast %cst_11 : f32 to vector<4x8x1xf32>
    %15 = arith.divf %14, %13 : vector<4x8x1xf32>
    %c0_12 = arith.constant 0 : index
    %c0_13 = arith.constant 0 : index
    %c0_14 = arith.constant 0 : index
    %16 = vector.load %arg4[%c0_12, %c0_13, %c0_14] : memref<4x8x16xf32, #tpu.memory_space<vmem>>, vector<4x8x16xf32>
    %17 = vector.broadcast %15 : vector<4x8x1xf32> to vector<4x8x16xf32>
    %18 = arith.mulf %16, %17 : vector<4x8x16xf32>
    %19 = arith.mulf %11, %18 : vector<4x8x16xf32>
    "tpu.trace_start"() <{level = 10 : i32, message = "bqk,bkd->bqd"}> : () -> ()
    %cst_15 = arith.constant dense<0.000000e+00> : vector<4x8x32xf32>
    %20 = tpu.matmul %19, %5, %cst_15 {dimension_numbers = #tpu.dot_dimension_numbers<[2], [1], [1], [2], [0, 0, 0, 1, 1, 2], [0], [0]>} : vector<4x8x16xf32>, vector<4x16x32xf32>, vector<4x8x32xf32> -> vector<4x8x32xf32>
    "tpu.trace_stop"() : () -> ()
    %c0_16 = arith.constant 0 : index
    %c0_17 = arith.constant 0 : index
    %c0_18 = arith.constant 0 : index
    %21 = vector.load %arg5[%c0_16, %c0_17, %c0_18] : memref<4x8x32xf32, #tpu.memory_space<vmem>>, vector<4x8x32xf32>
    tpu.vector_store %arg5[%c0_16, %c0_17, %c0_18], %20 {strides = array<i32>} : memref<4x8x32xf32, #tpu.memory_space<vmem>>, vector<4x8x32xf32>,
    return
  }
}

</mosaic_0001>

<llo_original>
// kernel: tpu_custom_call.1
$region0: #{tpu_custom_call.1}
  #allocation0 [shape = 'u32[]', space=smem, size = 0x4, offset = 0x4, fixed_abs, tag = 'smem constant byte address 0x4 - core index']
  #allocation1 [shape = 'u32[72,128]{1,0:T(1,128)}', space=vmem, size = 0x9000, scoped, tag = 'internal scratch']
  #allocation2 [shape = 'f32[1]{0:T(128)S(6)}', space=smem, size = 0x200, scoped, tag = 'scoped memory for tpu_custom_call.1']
  %s0 = inlined_call_operand.<no memory space> [shape: f32[1], index: 0, kind: input, shape index: {}]
  %s1 = inlined_call_operand.hbm [shape: f32[4,8,32], index: 1, kind: input, shape index: {}]
  %s2 = inlined_call_operand.hbm [shape: f32[4,16,32], index: 2, kind: input, shape index: {}]
  %s3 = inlined_call_operand.hbm [shape: f32[4,16,32], index: 3, kind: input, shape index: {}]
  %s4 = inlined_call_operand.hbm [shape: f32[4,8,16], index: 4, kind: input, shape index: {}]
  %s5 = inlined_call_operand.hbm [shape: f32[4,8,32], index: 5, kind: output, shape index: {}]
  %s6 = sld [smem:[#allocation0]]
  $region46: #{tpu_custom_call.1} parent=0
    _
  %s8 = ssub.s32 1, %s6
  %s9 = scalar_select 0, %s8, %s6
  %10 = sst [smem:[#allocation2]] %s0
  $region1: #{tpu_custom_call.1} parent=0
    #allocation3 [shape = 'u8[16384]{0}', space=vmem, size = 0x4000, scoped, tag = 'input window, operand 1, single buffered']
    #allocation4 [shape = 's32[1]{0}', space=sflag, size = 0x4, scoped, tag = 'scoped memory for tpu_custom_call.1']
    #allocation5 [shape = 's32[1]{0}', space=sflag, size = 0x4, scoped, tag = 'scoped memory for tpu_custom_call.1']
    #allocation6 [shape = 'u8[32768]{0}', space=vmem, size = 0x8000, scoped, tag = 'input window, operand 2, single buffered']
    #allocation7 [shape = 's32[1]{0}', space=sflag, size = 0x4, scoped, tag = 'scoped memory for tpu_custom_call.1']
    #allocation8 [shape = 'u8[32768]{0}', space=vmem, size = 0x8000, scoped, tag = 'input window, operand 3, single buffered']
    #allocation9 [shape = 'u8[16384]{0}', space=vmem, size = 0x4000, scoped, tag = 'input window, operand 4, single buffered']
    #allocation10 [shape = 's32[1]{0}', space=sflag, size = 0x4, scoped, tag = 'scoped memory for tpu_custom_call.1']
    #allocation11 [shape = 'u8[16384]{0}', space=vmem, size = 0x4000, scoped, tag = 'output window, operand 0, single buffered']
    %11 = vsyncpa [#allocation4], 0
    %12 = vsyncpa [#allocation7], 0
    %13 = vsyncpa [#allocation10], 0
    %14 = vsyncpa [#allocation5], 0
    // Predicated region
    $region2: #{tpu_custom_call.1} parent=1 // pred_check
      _
    $region3: #{tpu_custom_call.1} parent=1 // pred_check_branch
      %16 = sbr.rel (0) target = $region5
    $region4: #{tpu_custom_call.1} parent=1 // pred_region
      _
    $region5: #{tpu_custom_call.1} parent=1 // pred_fallthru
      _
    // Predicated region
    $region6: #{tpu_custom_call.1} parent=1 // pred_check
      _
    $region7: #{tpu_custom_call.1} parent=1 // pred_check_branch
      %18 = sbr.rel (0) target = $region9
    $region8: #{tpu_custom_call.1} parent=1 // pred_region
      %20 = vsyncadd [#allocation4], 0
      %s21 = sshll.u32 %s1, 4
      %s22 = int_to_ptr.hbm [resolvable:$true] %s21
      %s23 = sshll.u32 [#allocation3], 4
      %s24 = int_to_ptr.vmem [resolvable:$true] %s23
      %29 = dma.hbm_to_vmem [thread:$0]  %s22, 512, %s24, [#allocation4], 128, 128, 8
    $region9: #{tpu_custom_call.1} parent=1 // pred_fallthru
      _
    // Predicated region
    $region10: #{tpu_custom_call.1} parent=1 // pred_check
      _
    $region11: #{tpu_custom_call.1} parent=1 // pred_check_branch
      %31 = sbr.rel (0) target = $region13
    $region12: #{tpu_custom_call.1} parent=1 // pred_region
      %33 = vsyncadd [#allocation7], 0
      %s34 = sshll.u32 %s2, 4
      %s35 = int_to_ptr.hbm [resolvable:$true] %s34
      %s36 = sshll.u32 [#allocation6], 4
      %s37 = int_to_ptr.vmem [resolvable:$true] %s36
      %42 = dma.hbm_to_vmem [thread:$0]  %s35, 1024, %s37, [#allocation7], 128, 128, 8
    $region13: #{tpu_custom_call.1} parent=1 // pred_fallthru
      _
    // Predicated region
    $region14: #{tpu_custom_call.1} parent=1 // pred_check
      _
    $region15: #{tpu_custom_call.1} parent=1 // pred_check_branch
      %44 = sbr.rel (0) target = $region17
    $region16: #{tpu_custom_call.1} parent=1 // pred_region
      %46 = vsyncadd [#allocation7], 0
      %s47 = sshll.u32 %s3, 4
      %s48 = int_to_ptr.hbm [resolvable:$true] %s47
      %s49 = sshll.u32 [#allocation8], 4
      %s50 = int_to_ptr.vmem [resolvable:$true] %s49
      %55 = dma.hbm_to_vmem [thread:$0]  %s48, 1024, %s50, [#allocation7], 128, 128, 8
    $region17: #{tpu_custom_call.1} parent=1 // pred_fallthru
      _
    // Predicated region
    $region18: #{tpu_custom_call.1} parent=1 // pred_check
      _
    $region19: #{tpu_custom_call.1} parent=1 // pred_check_branch
      %57 = sbr.rel (0) target = $region21
    $region20: #{tpu_custom_call.1} parent=1 // pred_region
      %59 = vsyncadd [#allocation10], 0
      %s60 = sshll.u32 %s4, 4
      %s61 = int_to_ptr.hbm [resolvable:$true] %s60
      %s62 = sshll.u32 [#allocation9], 4
      %s63 = int_to_ptr.vmem [resolvable:$true] %s62
      %68 = dma.hbm_to_vmem [thread:$0]  %s61, 512, %s63, [#allocation10], 128, 128, 8
    $region21: #{tpu_custom_call.1} parent=1 // pred_fallthru
      _
    // Predicated region
    $region22: #{tpu_custom_call.1} parent=1 // pred_check
      _
    $region23: #{tpu_custom_call.1} parent=1 // pred_check_branch
      %70 = sbr.rel (0) target = $region25
    $region24: #{tpu_custom_call.1} parent=1 // pred_region
      %72 = dma.done [#allocation4], 512
    $region25: #{tpu_custom_call.1} parent=1 // pred_fallthru
      _
    // Predicated region
    $region26: #{tpu_custom_call.1} parent=1 // pred_check
      _
    $region27: #{tpu_custom_call.1} parent=1 // pred_check_branch
      %74 = sbr.rel (0) target = $region29
    $region28: #{tpu_custom_call.1} parent=1 // pred_region
      %76 = dma.done [#allocation7], 1024
    $region29: #{tpu_custom_call.1} parent=1 // pred_fallthru
      _
    // Predicated region
    $region30: #{tpu_custom_call.1} parent=1 // pred_check
      _
    $region31: #{tpu_custom_call.1} parent=1 // pred_check_branch
      %78 = sbr.rel (0) target = $region33
    $region32: #{tpu_custom_call.1} parent=1 // pred_region
      %80 = dma.done [#allocation7], 1024
    $region33: #{tpu_custom_call.1} parent=1 // pred_fallthru
      _
    // Predicated region
    $region34: #{tpu_custom_call.1} parent=1 // pred_check
      _
    $region35: #{tpu_custom_call.1} parent=1 // pred_check_branch
      %82 = sbr.rel (0) target = $region37
    $region36: #{tpu_custom_call.1} parent=1 // pred_region
      %84 = dma.done [#allocation10], 512
    $region37: #{tpu_custom_call.1} parent=1 // pred_fallthru
      _
    %s85 = sld [smem:[#allocation2]]
    %v86 = vld [vmem:[#allocation3] sm:$0xff]
    %v87 = vld [vmem:[#allocation3 + $0x8] sm:$0xff]
    %v88 = vld [vmem:[#allocation3 + $0x10] sm:$0xff]
    %v89 = vld [vmem:[#allocation3 + $0x18] sm:$0xff]
    %v90 = vstv %s85
    %v91 = vmul.f32 %v86, %v90
    %v92 = vmul.f32 %v87, %v90
    %v93 = vmul.f32 %v88, %v90
    %v94 = vmul.f32 %v89, %v90
    %v95 = vld [vmem:[#allocation6] sm:$0xff]
    %v96 = vld [vmem:[#allocation6 + $0x8] sm:$0xff]
    %v97 = vld [vmem:[#allocation6 + $0x10] sm:$0xff]
    %v98 = vld [vmem:[#allocation6 + $0x18] sm:$0xff]
    %v99 = vld [vmem:[#allocation6 + $0x20] sm:$0xff]
    %v100 = vld [vmem:[#allocation6 + $0x28] sm:$0xff]
    %v101 = vld [vmem:[#allocation6 + $0x30] sm:$0xff]
    %v102 = vld [vmem:[#allocation6 + $0x38] sm:$0xff]
    %v103 = vld [vmem:[#allocation8] sm:$0xff]
    %v104 = vld [vmem:[#allocation8 + $0x8] sm:$0xff]
    %v105 = vld [vmem:[#allocation8 + $0x10] sm:$0xff]
    %v106 = vld [vmem:[#allocation8 + $0x18] sm:$0xff]
    %v107 = vld [vmem:[#allocation8 + $0x20] sm:$0xff]
    %v108 = vld [vmem:[#allocation8 + $0x28] sm:$0xff]
    %v109 = vld [vmem:[#allocation8 + $0x30] sm:$0xff]
    %v110 = vld [vmem:[#allocation8 + $0x38] sm:$0xff]
    %vm111 = vcmask 261120
    %v113 = vsel %vm111, %v91, 0
    %v116 = vsel %vm111, %v95, 0
    %v119 = vsel %vm111, %v96, 0
    %121 = vmatpush.xpose.msra.mxu0 0.0
    %122 = vmatpush.xpose.msra.mxu0 0.0
    %123 = vmatpush.xpose.msra.mxu0 0.0
    %124 = vmatpush.xpose.msra.mxu0 0.0
    %125 = vmatpush.xpose.msra.mxu0 0.0
    %126 = vmatpush.xpose.msra.mxu0 0.0
    %127 = vmatpush.xpose.msra.mxu0 0.0
    %128 = vmatpush.xpose.msra.mxu0 0.0
    %129 = vmatpush.xpose.msra.mxu0 0.0
    %130 = vmatpush.xpose.msra.mxu0 0.0
    %131 = vmatpush.xpose.msra.mxu0 0.0
    %132 = vmatpush.xpose.msra.mxu0 0.0
    %133 = vmatpush.xpose.msra.mxu0 0.0
    %134 = vmatpush.xpose.msra.mxu0 0.0
    %135 = vmatpush.xpose.msra.mxu0 %v119
    %136 = vmatpush.xpose.msra.mxu0 %v116
    %137 = vmatmul.f32.gmra.mxu0 %v113
    %v138 = vpop.f32.mrf.mxu0
    %v139 = vadd.f32 0.0, %v138
    %140 = vdwg.mxu0
    %v142 = vsel %vm111, %v92, 0
    %v145 = vsel %vm111, %v97, 0
    %v148 = vsel %vm111, %v98, 0
    %150 = vmatpush.xpose.msra.mxu0 0.0
    %151 = vmatpush.xpose.msra.mxu0 0.0
    %152 = vmatpush.xpose.msra.mxu0 0.0
    %153 = vmatpush.xpose.msra.mxu0 0.0
    %154 = vmatpush.xpose.msra.mxu0 0.0
    %155 = vmatpush.xpose.msra.mxu0 0.0
    %156 = vmatpush.xpose.msra.mxu0 0.0
    %157 = vmatpush.xpose.msra.mxu0 0.0
    %158 = vmatpush.xpose.msra.mxu0 0.0
    %159 = vmatpush.xpose.msra.mxu0 0.0
    %160 = vmatpush.xpose.msra.mxu0 0.0
    %161 = vmatpush.xpose.msra.mxu0 0.0
    %162 = vmatpush.xpose.msra.mxu0 0.0
    %163 = vmatpush.xpose.msra.mxu0 0.0
    %164 = vmatpush.xpose.msra.mxu0 %v148
    %165 = vmatpush.xpose.msra.mxu0 %v145
    %166 = vmatmul.f32.gmra.mxu0 %v142
    %v167 = vpop.f32.mrf.mxu0
    %v168 = vadd.f32 0.0, %v167
    %169 = vdwg.mxu0
    %v171 = vsel %vm111, %v93, 0
    %v174 = vsel %vm111, %v99, 0
    %v177 = vsel %vm111, %v100, 0
    %179 = vmatpush.xpose.msra.mxu0 0.0
    %180 = vmatpush.xpose.msra.mxu0 0.0
    %181 = vmatpush.xpose.msra.mxu0 0.0
    %182 = vmatpush.xpose.msra.mxu0 0.0
    %183 = vmatpush.xpose.msra.mxu0 0.0
    %184 = vmatpush.xpose.msra.mxu0 0.0
    %185 = vmatpush.xpose.msra.mxu0 0.0
    %186 = vmatpush.xpose.msra.mxu0 0.0
    %187 = vmatpush.xpose.msra.mxu0 0.0
    %188 = vmatpush.xpose.msra.mxu0 0.0
    %189 = vmatpush.xpose.msra.mxu0 0.0
    %190 = vmatpush.xpose.msra.mxu0 0.0
    %191 = vmatpush.xpose.msra.mxu0 0.0
    %192 = vmatpush.xpose.msra.mxu0 0.0
    %193 = vmatpush.xpose.msra.mxu0 %v177
    %194 = vmatpush.xpose.msra.mxu0 %v174
    %195 = vmatmul.f32.gmra.mxu0 %v171
    %v196 = vpop.f32.mrf.mxu0
    %v197 = vadd.f32 0.0, %v196
    %198 = vdwg.mxu0
    %v200 = vsel %vm111, %v94, 0
    %v203 = vsel %vm111, %v101, 0
    %v206 = vsel %vm111, %v102, 0
    %208 = vmatpush.xpose.msra.mxu0 0.0
    %209 = vmatpush.xpose.msra.mxu0 0.0
    %210 = vmatpush.xpose.msra.mxu0 0.0
    %211 = vmatpush.xpose.msra.mxu0 0.0
    %212 = vmatpush.xpose.msra.mxu0 0.0
    %213 = vmatpush.xpose.msra.mxu0 0.0
    %214 = vmatpush.xpose.msra.mxu0 0.0
    %215 = vmatpush.xpose.msra.mxu0 0.0
    %216 = vmatpush.xpose.msra.mxu0 0.0
    %217 = vmatpush.xpose.msra.mxu0 0.0
    %218 = vmatpush.xpose.msra.mxu0 0.0
    %219 = vmatpush.xpose.msra.mxu0 0.0
    %220 = vmatpush.xpose.msra.mxu0 0.0
    %221 = vmatpush.xpose.msra.mxu0 0.0
    %222 = vmatpush.xpose.msra.mxu0 %v206
    %223 = vmatpush.xpose.msra.mxu0 %v203
    %224 = vmatmul.f32.gmra.mxu0 %v200
    %v225 = vpop.f32.mrf.mxu0
    %v226 = vadd.f32 0.0, %v225
    %227 = vdwg.mxu0
    %vm228 = vcmask 130048
    %v229 = vsel %vm228, %v139, -inf
    %230 = vmax.xlane.f32.xlu0 %v229
    %v231 = vpop.xlane.xlu0 %230
    %v232 = vsel %vm228, %v168, -inf
    %233 = vmax.xlane.f32.xlu0 %v232
    %v234 = vpop.xlane.xlu0 %233
    %v235 = vsel %vm228, %v197, -inf
    %236 = vmax.xlane.f32.xlu0 %v235
    %v237 = vpop.xlane.xlu0 %236
    %v238 = vsel %vm228, %v226, -inf
    %239 = vmax.xlane.f32.xlu0 %v238
    %v240 = vpop.xlane.xlu0 %239
    %v241 = vsub.f32 %v139, %v231
    %v242 = vsub.f32 %v168, %v234
    %v243 = vsub.f32 %v197, %v237
    %v244 = vsub.f32 %v226, %v240
    %v245 = vmul.f32 %v241, 1.442695
    %v246 = vpow.pop %v245
    %v247 = vmul.f32 %v242, 1.442695
    %v248 = vpow.pop %v247
    %v249 = vmul.f32 %v243, 1.442695
    %v250 = vpow.pop %v249
    %v251 = vmul.f32 %v244, 1.442695
    %v252 = vpow.pop %v251
    %v253 = vsel %vm228, %v246, 0.0
    %254 = vadd.xlane.f32.xlu0 %v253
    %v255 = vpop.xlane.xlu0 %254
    %v256 = vsel %vm228, %v248, 0.0
    %257 = vadd.xlane.f32.xlu0 %v256
    %v258 = vpop.xlane.xlu0 %257
    %v259 = vsel %vm228, %v250, 0.0
    %260 = vadd.xlane.f32.xlu0 %v259
    %v261 = vpop.xlane.xlu0 %260
    %v262 = vsel %vm228, %v252, 0.0
    %263 = vadd.xlane.f32.xlu0 %v262
    %v264 = vpop.xlane.xlu0 %263
    %v265 = vrcp.pop %v255
    %v266 = vmul.f32 %v255, %v265
    %v267 = vsub.f32 1.0, %v266
    %v268 = vmul.f32 %v265, %v267
    %v269 = vadd.f32 %v265, %v268
    %vm270 = vweird.f32 %v255
    %vm271 = vweird.f32 %v265
    %vm272 = vmor %vm270, %vm271
    %v273 = vsel %vm272, %v265, %v269
    %v274 = vand.u32 2147483647, %v255
    %vm275 = vcmp.eq.f32.partialorder %v274, 8.507059e+37
    %v276 = vand.u32 %v255, 2147483648
    %v277 = vor.u32 1.1754944e-38, %v276
    %v278 = vsel %vm275, %v277, %v273
    %v279 = vmul.f32 1.0, %v278
    %v280 = vrcp.pop %v258
    %v281 = vmul.f32 %v258, %v280
    %v282 = vsub.f32 1.0, %v281
    %v283 = vmul.f32 %v280, %v282
    %v284 = vadd.f32 %v280, %v283
    %vm285 = vweird.f32 %v258
    %vm286 = vweird.f32 %v280
    %vm287 = vmor %vm285, %vm286
    %v288 = vsel %vm287, %v280, %v284
    %v289 = vand.u32 2147483647, %v258
    %vm290 = vcmp.eq.f32.partialorder %v289, 8.507059e+37
    %v291 = vand.u32 %v258, 2147483648
    %v292 = vor.u32 1.1754944e-38, %v291
    %v293 = vsel %vm290, %v292, %v288
    %v294 = vmul.f32 1.0, %v293
    %v295 = vrcp.pop %v261
    %v296 = vmul.f32 %v261, %v295
    %v297 = vsub.f32 1.0, %v296
    %v298 = vmul.f32 %v295, %v297
    %v299 = vadd.f32 %v295, %v298
    %vm300 = vweird.f32 %v261
    %vm301 = vweird.f32 %v295
    %vm302 = vmor %vm300, %vm301
    %v303 = vsel %vm302, %v295, %v299
    %v304 = vand.u32 2147483647, %v261
    %vm305 = vcmp.eq.f32.partialorder %v304, 8.507059e+37
    %v306 = vand.u32 %v261, 2147483648
    %v307 = vor.u32 1.1754944e-38, %v306
    %v308 = vsel %vm305, %v307, %v303
    %v309 = vmul.f32 1.0, %v308
    %v310 = vrcp.pop %v264
    %v311 = vmul.f32 %v264, %v310
    %v312 = vsub.f32 1.0, %v311
    %v313 = vmul.f32 %v310, %v312
    %v314 = vadd.f32 %v310, %v313
    %vm315 = vweird.f32 %v264
    %vm316 = vweird.f32 %v310
    %vm317 = vmor %vm315, %vm316
    %v318 = vsel %vm317, %v310, %v314
    %v319 = vand.u32 2147483647, %v264
    %vm320 = vcmp.eq.f32.partialorder %v319, 8.507059e+37
    %v321 = vand.u32 %v264, 2147483648
    %v322 = vor.u32 1.1754944e-38, %v321
    %v323 = vsel %vm320, %v322, %v318
    %v324 = vmul.f32 1.0, %v323
    %v325 = vld [vmem:[#allocation9] sm:$0xff]
    %v326 = vld [vmem:[#allocation9 + $0x8] sm:$0xff]
    %v327 = vld [vmem:[#allocation9 + $0x10] sm:$0xff]
    %v328 = vld [vmem:[#allocation9 + $0x18] sm:$0xff]
    %v329 = vmul.f32 %v325, %v279
    %v330 = vmul.f32 %v326, %v294
    %v331 = vmul.f32 %v327, %v309
    %v332 = vmul.f32 %v328, %v324
    %v333 = vmul.f32 %v246, %v329
    %v334 = vmul.f32 %v248, %v330
    %v335 = vmul.f32 %v250, %v331
    %v336 = vmul.f32 %v252, %v332
    %v338 = vsel %vm228, %v333, 0
    %340 = vmatpush.msra.mxu0 0.0
    %341 = vmatpush.msra.mxu0 0.0
    %342 = vmatpush.msra.mxu0 0.0
    %343 = vmatpush.msra.mxu0 0.0
    %344 = vmatpush.msra.mxu0 0.0
    %345 = vmatpush.msra.mxu0 0.0
    %346 = vmatpush.msra.mxu0 0.0
    %347 = vmatpush.msra.mxu0 0.0
    %348 = vmatpush.msra.mxu0 0.0
    %349 = vmatpush.msra.mxu0 0.0
    %350 = vmatpush.msra.mxu0 0.0
    %351 = vmatpush.msra.mxu0 0.0
    %352 = vmatpush.msra.mxu0 0.0
    %353 = vmatpush.msra.mxu0 0.0
    %354 = vmatpush.msra.mxu0 %v104
    %355 = vmatpush.msra.mxu0 %v103
    %356 = vmatmul.f32.gmra.mxu0 %v338
    %v357 = vpop.f32.mrf.mxu0
    %v358 = vadd.f32 0.0, %v357
    %359 = vdwg.mxu0
    %v361 = vsel %vm228, %v334, 0
    %363 = vmatpush.msra.mxu0 0.0
    %364 = vmatpush.msra.mxu0 0.0
    %365 = vmatpush.msra.mxu0 0.0
    %366 = vmatpush.msra.mxu0 0.0
    %367 = vmatpush.msra.mxu0 0.0
    %368 = vmatpush.msra.mxu0 0.0
    %369 = vmatpush.msra.mxu0 0.0
    %370 = vmatpush.msra.mxu0 0.0
    %371 = vmatpush.msra.mxu0 0.0
    %372 = vmatpush.msra.mxu0 0.0
    %373 = vmatpush.msra.mxu0 0.0
    %374 = vmatpush.msra.mxu0 0.0
    %375 = vmatpush.msra.mxu0 0.0
    %376 = vmatpush.msra.mxu0 0.0
    %377 = vmatpush.msra.mxu0 %v106
    %378 = vmatpush.msra.mxu0 %v105
    %379 = vmatmul.f32.gmra.mxu0 %v361
    %v380 = vpop.f32.mrf.mxu0
    %v381 = vadd.f32 0.0, %v380
    %382 = vdwg.mxu0
    %v384 = vsel %vm228, %v335, 0
    %386 = vmatpush.msra.mxu0 0.0
    %387 = vmatpush.msra.mxu0 0.0
    %388 = vmatpush.msra.mxu0 0.0
    %389 = vmatpush.msra.mxu0 0.0
    %390 = vmatpush.msra.mxu0 0.0
    %391 = vmatpush.msra.mxu0 0.0
    %392 = vmatpush.msra.mxu0 0.0
    %393 = vmatpush.msra.mxu0 0.0
    %394 = vmatpush.msra.mxu0 0.0
    %395 = vmatpush.msra.mxu0 0.0
    %396 = vmatpush.msra.mxu0 0.0
    %397 = vmatpush.msra.mxu0 0.0
    %398 = vmatpush.msra.mxu0 0.0
    %399 = vmatpush.msra.mxu0 0.0
    %400 = vmatpush.msra.mxu0 %v108
    %401 = vmatpush.msra.mxu0 %v107
    %402 = vmatmul.f32.gmra.mxu0 %v384
    %v403 = vpop.f32.mrf.mxu0
    %v404 = vadd.f32 0.0, %v403
    %405 = vdwg.mxu0
    %v407 = vsel %vm228, %v336, 0
    %409 = vmatpush.msra.mxu0 0.0
    %410 = vmatpush.msra.mxu0 0.0
    %411 = vmatpush.msra.mxu0 0.0
    %412 = vmatpush.msra.mxu0 0.0
    %413 = vmatpush.msra.mxu0 0.0
    %414 = vmatpush.msra.mxu0 0.0
    %415 = vmatpush.msra.mxu0 0.0
    %416 = vmatpush.msra.mxu0 0.0
    %417 = vmatpush.msra.mxu0 0.0
    %418 = vmatpush.msra.mxu0 0.0
    %419 = vmatpush.msra.mxu0 0.0
    %420 = vmatpush.msra.mxu0 0.0
    %421 = vmatpush.msra.mxu0 0.0
    %422 = vmatpush.msra.mxu0 0.0
    %423 = vmatpush.msra.mxu0 %v110
    %424 = vmatpush.msra.mxu0 %v109
    %425 = vmatmul.f32.gmra.mxu0 %v407
    %v426 = vpop.f32.mrf.mxu0
    %v427 = vadd.f32 0.0, %v426
    %428 = vdwg.mxu0
    %429 = vst.msk [vmem:[#allocation11] sm:$0xff] %vm111, %v358
    %430 = vst.msk [vmem:[#allocation11 + $0x8] sm:$0xff] %vm111, %v381
    %431 = vst.msk [vmem:[#allocation11 + $0x10] sm:$0xff] %vm111, %v404
    %432 = vst.msk [vmem:[#allocation11 + $0x18] sm:$0xff] %vm111, %v427
    // Predicated region
    $region38: #{tpu_custom_call.1} parent=1 // pred_check
      _
    $region39: #{tpu_custom_call.1} parent=1 // pred_check_branch
      %434 = sbr.rel (0) target = $region41
    $region40: #{tpu_custom_call.1} parent=1 // pred_region
      %436 = vsyncadd [#allocation5], 0
      %s437 = sshll.u32 [#allocation11], 4
      %s438 = int_to_ptr.vmem [resolvable:$true] %s437
      %s439 = sshll.u32 %s5, 4
      %s440 = int_to_ptr.hbm [resolvable:$true] %s439
      %445 = dma.vmem_to_hbm [thread:$0]  %s438, 512, %s440, [#allocation5], 128, 128, 8
    $region41: #{tpu_custom_call.1} parent=1 // pred_fallthru
      _
    // Predicated region
    $region42: #{tpu_custom_call.1} parent=1 // pred_check
      _
    $region43: #{tpu_custom_call.1} parent=1 // pred_check_branch
      %447 = sbr.rel (0) target = $region45
    $region44: #{tpu_custom_call.1} parent=1 // pred_region
      %449 = dma.done [#allocation5], 512
    $region45: #{tpu_custom_call.1} parent=1 // pred_fallthru
      _
    %450 = vsyncpa [#allocation4], 1
    %451 = vsyncpa [#allocation7], 1
    %452 = vsyncpa [#allocation10], 1
    %453 = vsyncpa [#allocation5], 1

</llo_original>
